<compile_context>
chip_gen: v5e
topology: v5e:2x2
jax: 0.10.0
libtpu: 0.0.40
codegen_flags: <defaults>
</compile_context>

<pallas_src>
import functools

import jax
import jax.numpy as jnp
from jax.experimental import pallas as pl
from jax.experimental.pallas import tpu as pltpu


DEFAULT_BLOCK_ROWS = 512  # 512 x 128 f32 = 256 KiB per input block
LANES = 128


def _plcc_loss_kernel(meta_ref, x_ref, y_ref, out_ref,
                      sx_ref, sy_ref, sxx_ref, syy_ref, sxy_ref):
    # meta_ref : SMEM (2,) int32  -> [n_true_elements, n_valid_rows]
    # x_ref    : VMEM (block_rows, 128) input dtype (zero-padded inside valid rows)
    # y_ref    : VMEM (block_rows, 128) input dtype
    # out_ref  : SMEM (1,) float32 scalar loss
    # s*_ref   : VMEM (8, 128) float32 partial-sum accumulators
    pid = pl.program_id(0)
    nsteps = pl.num_programs(0)
    block_rows, lanes = x_ref.shape
    groups = block_rows // 8  # block_rows is always a multiple of 8

    @pl.when(pid == 0)
    def _init():
        sx_ref[...] = jnp.zeros_like(sx_ref)
        sy_ref[...] = jnp.zeros_like(sy_ref)
        sxx_ref[...] = jnp.zeros_like(sxx_ref)
        syy_ref[...] = jnp.zeros_like(syy_ref)
        sxy_ref[...] = jnp.zeros_like(sxy_ref)

    rows_total = meta_ref[1]
    rows_valid = rows_total - pid * block_rows  # rows still valid in this block
    is_full = rows_valid >= block_rows

    def accumulate(x, y):
        # Fold (block_rows, 128) -> (groups, 8, 128) and reduce the leading axis:
        # pure VPU vreg adds into the resident (8, 128) accumulators.
        xs = x.reshape(groups, 8, lanes)
        ys = y.reshape(groups, 8, lanes)
        sx_ref[...] += jnp.sum(xs, axis=0)
        sy_ref[...] += jnp.sum(ys, axis=0)
        sxx_ref[...] += jnp.sum(xs * xs, axis=0)
        syy_ref[...] += jnp.sum(ys * ys, axis=0)
        sxy_ref[...] += jnp.sum(xs * ys, axis=0)

    @pl.when(is_full)
    def _full_block():
        accumulate(x_ref[...].astype(jnp.float32),
                   y_ref[...].astype(jnp.float32))

    @pl.when(jnp.logical_not(is_full))
    def _tail_block():
        # Only the final (partial) block pays for the mask; rows past the end
        # of the array are unspecified and must be zeroed before accumulation.
        row_idx = jax.lax.broadcasted_iota(jnp.int32, (block_rows, lanes), 0)
        mask = row_idx < rows_valid
        accumulate(jnp.where(mask, x_ref[...].astype(jnp.float32), 0.0),
                   jnp.where(mask, y_ref[...].astype(jnp.float32), 0.0))

    @pl.when(pid == nsteps - 1)
    def _finalize():
        nf = meta_ref[0].astype(jnp.float32)
        sum_x = jnp.sum(sx_ref[...])
        sum_y = jnp.sum(sy_ref[...])
        sum_xx = jnp.sum(sxx_ref[...])
        sum_yy = jnp.sum(syy_ref[...])
        sum_xy = jnp.sum(sxy_ref[...])

        xmean = sum_x / nf
        ymean = sum_y / nf
        # Centered second moments via the one-pass identities; clamp tiny
        # negative values caused by floating-point cancellation.
        ssxm = jnp.maximum(sum_xx - nf * xmean * xmean, 0.0)
        ssym = jnp.maximum(sum_yy - nf * ymean * ymean, 0.0)
        sxy = sum_xy - nf * xmean * ymean

        bias = jnp.float32(1e-8)
        normxm = jnp.sqrt(ssxm) + bias
        normym = jnp.sqrt(ssym) + bias
        # Divide once by a scalar instead of per-element divides.
        r = sxy / (normxm * normym)
        out_ref[0] = jnp.log(1.0 - r)


@jax.jit
def plcc_loss(pred, target):
    """JAX/Pallas equivalent of PlccLoss().forward(pred, target)."""
    x = jnp.reshape(pred, (-1,))
    y = jnp.reshape(target, (-1,))
    n = x.shape[0]
    assert n == y.shape[0], "input and target must have the same length"
    assert n >= 2, "input length must be greater than 2"

    # Keep native floating dtype (halves HBM traffic for bf16/f16); upcast
    # happens inside the kernel.  Non-float inputs are promoted here.
    if not jnp.issubdtype(x.dtype, jnp.floating):
        x = x.astype(jnp.float32)
    if not jnp.issubdtype(y.dtype, jnp.floating):
        y = y.astype(jnp.float32)

    # Pad only to the next multiple of 128 lanes (no-op when n % 128 == 0);
    # the zero padding contributes nothing to any of the five sums.
    pad = (-n) % LANES
    if pad:
        x = jnp.pad(x, (0, pad))
        y = jnp.pad(y, (0, pad))
    rows = (n + pad) // LANES
    x2 = x.reshape(rows, LANES)
    y2 = y.reshape(rows, LANES)

    block_rows = DEFAULT_BLOCK_ROWS
    if rows < block_rows:
        block_rows = max(8, ((rows + 7) // 8) * 8)
    grid = (pl.cdiv(rows, block_rows),)

    meta = jnp.array([n, rows], dtype=jnp.int32)

    loss = pl.pallas_call(
        _plcc_loss_kernel,
        out_shape=jax.ShapeDtypeStruct((1,), jnp.float32),
        grid=grid,
        in_specs=[
            pl.BlockSpec(memory_space=pltpu.SMEM),                   # meta scalars
            pl.BlockSpec((block_rows, LANES), lambda i: (i, 0)),     # pred tiles
            pl.BlockSpec((block_rows, LANES), lambda i: (i, 0)),     # target tiles
        ],
        out_specs=pl.BlockSpec(memory_space=pltpu.SMEM),             # scalar loss
        scratch_shapes=[pltpu.VMEM((8, LANES), jnp.float32)] * 5,
        compiler_params=pltpu.CompilerParams(
            dimension_semantics=("arbitrary",),
            vmem_limit_bytes=32 * 1024 * 1024,
        ),
    )(meta, x2, y2)
    return loss[0]


def _plcc_loss_ref(pred, target):
    x = jnp.reshape(pred, (-1,)).astype(jnp.float32)
    y = jnp.reshape(target, (-1,)).astype(jnp.float32)
    xm = x - jnp.mean(x)
    ym = y - jnp.mean(y)
    bias = 1e-8
    r = jnp.dot(xm / (jnp.linalg.norm(xm) + bias),
                ym / (jnp.linalg.norm(ym) + bias))
    return jnp.log(1.0 - r)


if __name__ == "__main__":
    key = jax.random.PRNGKey(0)
    k1, k2, k3, k4, k5, k6 = jax.random.split(key, 6)

    # Case 1: small VQA-style score tensor; n = 2048 (multiple of 128, no pad,
    # single full block).
    pred1 = jax.random.normal(k1, (2, 4, 16, 16), dtype=jnp.float32)
    target1 = 0.5 * pred1 + 0.5 * jax.random.normal(k2, (2, 4, 16, 16),
                                                    dtype=jnp.float32)
    out1 = plcc_loss(pred1, target1)
    jax.block_until_ready(out1)
    ref1 = _plcc_loss_ref(pred1, target1)
    assert jnp.allclose(out1, ref1, atol=1e-4, rtol=1e-4), (out1, ref1)

    # Case 2: ragged length (n = 1155, not a multiple of 128) exercising the
    # lane padding and the masked tail block.
    pred2 = jax.random.normal(k3, (3, 5, 7, 11), dtype=jnp.float32)
    target2 = -0.3 * pred2 + jax.random.normal(k4, (3, 5, 7, 11),
                                               dtype=jnp.float32)
    out2 = plcc_loss(pred2, target2)
    jax.block_until_ready(out2)
    ref2 = _plcc_loss_ref(pred2, target2)
    assert jnp.allclose(out2, ref2, atol=1e-4, rtol=1e-4), (out2, ref2)

    # Case 3: larger tensor (n = 73728 -> 576 rows) exercising the multi-step
    # streaming grid (2 steps, second one partial).
    pred3 = jax.random.normal(k5, (2, 4, 96, 96), dtype=jnp.float32)
    target3 = 0.7 * pred3 + 0.3 * jax.random.normal(k6, (2, 4, 96, 96),
                                                    dtype=jnp.float32)
    out3 = plcc_loss(pred3, target3)
    jax.block_until_ready(out3)
    ref3 = _plcc_loss_ref(pred3, target3)
    assert jnp.allclose(out3, ref3, atol=1e-4, rtol=1e-4), (out3, ref3)

    print("KERNEL_OK")
</pallas_src>

<mosaic_0001>
module attributes {stable_mosaic.version = 11 : i64} {
  func.func @_plcc_loss_kernel(%arg0: i32, %arg1: memref<2xi32, #tpu.memory_space<smem>>, %arg2: memref<16x128xf32, #tpu.memory_space<vmem>>, %arg3: memref<16x128xf32, #tpu.memory_space<vmem>>, %arg4: memref<1xf32, #tpu.memory_space<smem>>, %arg5: memref<8x128xf32, #tpu.memory_space<vmem>>, %arg6: memref<8x128xf32, #tpu.memory_space<vmem>>, %arg7: memref<8x128xf32, #tpu.memory_space<vmem>>, %arg8: memref<8x128xf32, #tpu.memory_space<vmem>>, %arg9: memref<8x128xf32, #tpu.memory_space<vmem>>) attributes {dimension_semantics = [#tpu.dimension_semantics<arbitrary>], iteration_bounds = array<i64: 1>, scalar_prefetch = 0 : i64, scratch_operands = 5 : i64, tpu.core_type = #tpu.core_type<tc>, window_params = [{transform_indices = @transform_0, window_bounds = array<i64: 2>}, {transform_indices = @transform_1, window_bounds = array<i64: 16, 128>}, {transform_indices = @transform_2, window_bounds = array<i64: 16, 128>}, {transform_indices = @transform_3, window_bounds = array<i64: 1>}]} {
    %c0_i32 = arith.constant 0 : i32
    %0 = arith.cmpi eq, %arg0, %c0_i32 : i32
    %1 = arith.extui %0 : i1 to i32
    %c0_i32_0 = arith.constant 0 : i32
    %2 = arith.cmpi ne, %1, %c0_i32_0 : i32
    scf.if %2 {
      %cst = arith.constant 0.000000e+00 : f32
      %15 = vector.broadcast %cst : f32 to vector<8x128xf32>
      %c0 = arith.constant 0 : index
      %c0_6 = arith.constant 0 : index
      %16 = vector.load %arg5[%c0, %c0_6] : memref<8x128xf32, #tpu.memory_space<vmem>>, vector<8x128xf32>
      tpu.vector_store %arg5[%c0, %c0_6], %15 {strides = array<i32>} : memref<8x128xf32, #tpu.memory_space<vmem>>, vector<8x128xf32>,
      %cst_7 = arith.constant 0.000000e+00 : f32
      %17 = vector.broadcast %cst_7 : f32 to vector<8x128xf32>
      %c0_8 = arith.constant 0 : index
      %c0_9 = arith.constant 0 : index
      %18 = vector.load %arg6[%c0_8, %c0_9] : memref<8x128xf32, #tpu.memory_space<vmem>>, vector<8x128xf32>
      tpu.vector_store %arg6[%c0_8, %c0_9], %17 {strides = array<i32>} : memref<8x128xf32, #tpu.memory_space<vmem>>, vector<8x128xf32>,
      %cst_10 = arith.constant 0.000000e+00 : f32
      %19 = vector.broadcast %cst_10 : f32 to vector<8x128xf32>
      %c0_11 = arith.constant 0 : index
      %c0_12 = arith.constant 0 : index
      %20 = vector.load %arg7[%c0_11, %c0_12] : memref<8x128xf32, #tpu.memory_space<vmem>>, vector<8x128xf32>
      tpu.vector_store %arg7[%c0_11, %c0_12], %19 {strides = array<i32>} : memref<8x128xf32, #tpu.memory_space<vmem>>, vector<8x128xf32>,
      %cst_13 = arith.constant 0.000000e+00 : f32
      %21 = vector.broadcast %cst_13 : f32 to vector<8x128xf32>
      %c0_14 = arith.constant 0 : index
      %c0_15 = arith.constant 0 : index
      %22 = vector.load %arg8[%c0_14, %c0_15] : memref<8x128xf32, #tpu.memory_space<vmem>>, vector<8x128xf32>
      tpu.vector_store %arg8[%c0_14, %c0_15], %21 {strides = array<i32>} : memref<8x128xf32, #tpu.memory_space<vmem>>, vector<8x128xf32>,
      %cst_16 = arith.constant 0.000000e+00 : f32
      %23 = vector.broadcast %cst_16 : f32 to vector<8x128xf32>
      %c0_17 = arith.constant 0 : index
      %c0_18 = arith.constant 0 : index
      %24 = vector.load %arg9[%c0_17, %c0_18] : memref<8x128xf32, #tpu.memory_space<vmem>>, vector<8x128xf32>
      tpu.vector_store %arg9[%c0_17, %c0_18], %23 {strides = array<i32>} : memref<8x128xf32, #tpu.memory_space<vmem>>, vector<8x128xf32>,
    } else {
    }
    %c1 = arith.constant 1 : index
    %3 = memref.load %arg1[%c1] : memref<2xi32, #tpu.memory_space<smem>>
    %c16_i32 = arith.constant 16 : i32
    %4 = arith.muli %arg0, %c16_i32 : i32
    %5 = arith.subi %3, %4 : i32
    %c16_i32_1 = arith.constant 16 : i32
    %6 = arith.cmpi sge, %5, %c16_i32_1 : i32
    %7 = arith.extui %6 : i1 to i32
    %c0_i32_2 = arith.constant 0 : i32
    %8 = arith.cmpi ne, %7, %c0_i32_2 : i32
    scf.if %8 {
      %c0 = arith.constant 0 : index
      %c0_6 = arith.constant 0 : index
      %15 = vector.load %arg2[%c0, %c0_6] : memref<16x128xf32, #tpu.memory_space<vmem>>, vector<16x128xf32>
      %c0_7 = arith.constant 0 : index
      %c0_8 = arith.constant 0 : index
      %16 = vector.load %arg3[%c0_7, %c0_8] : memref<16x128xf32, #tpu.memory_space<vmem>>, vector<16x128xf32>
      %17 = vector.shape_cast %15 : vector<16x128xf32> to vector<2x8x128xf32>
      %18 = vector.shape_cast %16 : vector<16x128xf32> to vector<2x8x128xf32>
      %c0_9 = arith.constant 0 : index
      %c0_10 = arith.constant 0 : index
      %19 = vector.load %arg5[%c0_9, %c0_10] : memref<8x128xf32, #tpu.memory_space<vmem>>, vector<8x128xf32>
      %cst = arith.constant dense<0.000000e+00> : vector<8x128xf32>
      %20 = vector.multi_reduction <add>, %17, %cst [0] : vector<2x8x128xf32> to vector<8x128xf32>
      %21 = arith.addf %19, %20 : vector<8x128xf32>
      %c0_11 = arith.constant 0 : index
      %c0_12 = arith.constant 0 : index
      %22 = vector.load %arg5[%c0_11, %c0_12] : memref<8x128xf32, #tpu.memory_space<vmem>>, vector<8x128xf32>
      tpu.vector_store %arg5[%c0_11, %c0_12], %21 {strides = array<i32>} : memref<8x128xf32, #tpu.memory_space<vmem>>, vector<8x128xf32>,
      %c0_13 = arith.constant 0 : index
      %c0_14 = arith.constant 0 : index
      %23 = vector.load %arg6[%c0_13, %c0_14] : memref<8x128xf32, #tpu.memory_space<vmem>>, vector<8x128xf32>
      %cst_15 = arith.constant dense<0.000000e+00> : vector<8x128xf32>
      %24 = vector.multi_reduction <add>, %18, %cst_15 [0] : vector<2x8x128xf32> to vector<8x128xf32>
      %25 = arith.addf %23, %24 : vector<8x128xf32>
      %c0_16 = arith.constant 0 : index
      %c0_17 = arith.constant 0 : index
      %26 = vector.load %arg6[%c0_16, %c0_17] : memref<8x128xf32, #tpu.memory_space<vmem>>, vector<8x128xf32>
      tpu.vector_store %arg6[%c0_16, %c0_17], %25 {strides = array<i32>} : memref<8x128xf32, #tpu.memory_space<vmem>>, vector<8x128xf32>,
      %c0_18 = arith.constant 0 : index
      %c0_19 = arith.constant 0 : index
      %27 = vector.load %arg7[%c0_18, %c0_19] : memref<8x128xf32, #tpu.memory_space<vmem>>, vector<8x128xf32>
      %28 = arith.mulf %17, %17 : vector<2x8x128xf32>
      %cst_20 = arith.constant dense<0.000000e+00> : vector<8x128xf32>
      %29 = vector.multi_reduction <add>, %28, %cst_20 [0] : vector<2x8x128xf32> to vector<8x128xf32>
      %30 = arith.addf %27, %29 : vector<8x128xf32>
      %c0_21 = arith.constant 0 : index
      %c0_22 = arith.constant 0 : index
      %31 = vector.load %arg7[%c0_21, %c0_22] : memref<8x128xf32, #tpu.memory_space<vmem>>, vector<8x128xf32>
      tpu.vector_store %arg7[%c0_21, %c0_22], %30 {strides = array<i32>} : memref<8x128xf32, #tpu.memory_space<vmem>>, vector<8x128xf32>,
      %c0_23 = arith.constant 0 : index
      %c0_24 = arith.constant 0 : index
      %32 = vector.load %arg8[%c0_23, %c0_24] : memref<8x128xf32, #tpu.memory_space<vmem>>, vector<8x128xf32>
      %33 = arith.mulf %18, %18 : vector<2x8x128xf32>
      %cst_25 = arith.constant dense<0.000000e+00> : vector<8x128xf32>
      %34 = vector.multi_reduction <add>, %33, %cst_25 [0] : vector<2x8x128xf32> to vector<8x128xf32>
      %35 = arith.addf %32, %34 : vector<8x128xf32>
      %c0_26 = arith.constant 0 : index
      %c0_27 = arith.constant 0 : index
      %36 = vector.load %arg8[%c0_26, %c0_27] : memref<8x128xf32, #tpu.memory_space<vmem>>, vector<8x128xf32>
      tpu.vector_store %arg8[%c0_26, %c0_27], %35 {strides = array<i32>} : memref<8x128xf32, #tpu.memory_space<vmem>>, vector<8x128xf32>,
      %c0_28 = arith.constant 0 : index
      %c0_29 = arith.constant 0 : index
      %37 = vector.load %arg9[%c0_28, %c0_29] : memref<8x128xf32, #tpu.memory_space<vmem>>, vector<8x128xf32>
      %38 = arith.mulf %17, %18 : vector<2x8x128xf32>
      %cst_30 = arith.constant dense<0.000000e+00> : vector<8x128xf32>
      %39 = vector.multi_reduction <add>, %38, %cst_30 [0] : vector<2x8x128xf32> to vector<8x128xf32>
      %40 = arith.addf %37, %39 : vector<8x128xf32>
      %c0_31 = arith.constant 0 : index
      %c0_32 = arith.constant 0 : index
      %41 = vector.load %arg9[%c0_31, %c0_32] : memref<8x128xf32, #tpu.memory_space<vmem>>, vector<8x128xf32>
      tpu.vector_store %arg9[%c0_31, %c0_32], %40 {strides = array<i32>} : memref<8x128xf32, #tpu.memory_space<vmem>>, vector<8x128xf32>,
    } else {
    }
    %true = arith.constant true
    %9 = arith.xori %6, %true : i1
    %10 = arith.extui %9 : i1 to i32
    %c0_i32_3 = arith.constant 0 : i32
    %11 = arith.cmpi ne, %10, %c0_i32_3 : i32
    scf.if %11 {
      %15 = tpu.iota {dimensions = array<i32: 0>} : vector<16x128xi32>
      %16 = vector.broadcast %5 : i32 to vector<16x128xi32>
      %17 = arith.cmpi slt, %15, %16 : vector<16x128xi32>
      %c0 = arith.constant 0 : index
      %c0_6 = arith.constant 0 : index
      %18 = vector.load %arg2[%c0, %c0_6] : memref<16x128xf32, #tpu.memory_space<vmem>>, vector<16x128xf32>
      %cst = arith.constant 0.000000e+00 : f32
      %19 = vector.broadcast %cst : f32 to vector<16x128xf32>
      %20 = arith.select %17, %18, %19 : vector<16x128xi1>, vector<16x128xf32>
      %c0_7 = arith.constant 0 : index
      %c0_8 = arith.constant 0 : index
      %21 = vector.load %arg3[%c0_7, %c0_8] : memref<16x128xf32, #tpu.memory_space<vmem>>, vector<16x128xf32>
      %cst_9 = arith.constant 0.000000e+00 : f32
      %22 = vector.broadcast %cst_9 : f32 to vector<16x128xf32>
      %23 = arith.select %17, %21, %22 : vector<16x128xi1>, vector<16x128xf32>
      %24 = vector.shape_cast %20 : vector<16x128xf32> to vector<2x8x128xf32>
      %25 = vector.shape_cast %23 : vector<16x128xf32> to vector<2x8x128xf32>
      %c0_10 = arith.constant 0 : index
      %c0_11 = arith.constant 0 : index
      %26 = vector.load %arg5[%c0_10, %c0_11] : memref<8x128xf32, #tpu.memory_space<vmem>>, vector<8x128xf32>
      %cst_12 = arith.constant dense<0.000000e+00> : vector<8x128xf32>
      %27 = vector.multi_reduction <add>, %24, %cst_12 [0] : vector<2x8x128xf32> to vector<8x128xf32>
      %28 = arith.addf %26, %27 : vector<8x128xf32>
      %c0_13 = arith.constant 0 : index
      %c0_14 = arith.constant 0 : index
      %29 = vector.load %arg5[%c0_13, %c0_14] : memref<8x128xf32, #tpu.memory_space<vmem>>, vector<8x128xf32>
      tpu.vector_store %arg5[%c0_13, %c0_14], %28 {strides = array<i32>} : memref<8x128xf32, #tpu.memory_space<vmem>>, vector<8x128xf32>,
      %c0_15 = arith.constant 0 : index
      %c0_16 = arith.constant 0 : index
      %30 = vector.load %arg6[%c0_15, %c0_16] : memref<8x128xf32, #tpu.memory_space<vmem>>, vector<8x128xf32>
      %cst_17 = arith.constant dense<0.000000e+00> : vector<8x128xf32>
      %31 = vector.multi_reduction <add>, %25, %cst_17 [0] : vector<2x8x128xf32> to vector<8x128xf32>
      %32 = arith.addf %30, %31 : vector<8x128xf32>
      %c0_18 = arith.constant 0 : index
      %c0_19 = arith.constant 0 : index
      %33 = vector.load %arg6[%c0_18, %c0_19] : memref<8x128xf32, #tpu.memory_space<vmem>>, vector<8x128xf32>
      tpu.vector_store %arg6[%c0_18, %c0_19], %32 {strides = array<i32>} : memref<8x128xf32, #tpu.memory_space<vmem>>, vector<8x128xf32>,
      %c0_20 = arith.constant 0 : index
      %c0_21 = arith.constant 0 : index
      %34 = vector.load %arg7[%c0_20, %c0_21] : memref<8x128xf32, #tpu.memory_space<vmem>>, vector<8x128xf32>
      %35 = arith.mulf %24, %24 : vector<2x8x128xf32>
      %cst_22 = arith.constant dense<0.000000e+00> : vector<8x128xf32>
      %36 = vector.multi_reduction <add>, %35, %cst_22 [0] : vector<2x8x128xf32> to vector<8x128xf32>
      %37 = arith.addf %34, %36 : vector<8x128xf32>
      %c0_23 = arith.constant 0 : index
      %c0_24 = arith.constant 0 : index
      %38 = vector.load %arg7[%c0_23, %c0_24] : memref<8x128xf32, #tpu.memory_space<vmem>>, vector<8x128xf32>
      tpu.vector_store %arg7[%c0_23, %c0_24], %37 {strides = array<i32>} : memref<8x128xf32, #tpu.memory_space<vmem>>, vector<8x128xf32>,
      %c0_25 = arith.constant 0 : index
      %c0_26 = arith.constant 0 : index
      %39 = vector.load %arg8[%c0_25, %c0_26] : memref<8x128xf32, #tpu.memory_space<vmem>>, vector<8x128xf32>
      %40 = arith.mulf %25, %25 : vector<2x8x128xf32>
      %cst_27 = arith.constant dense<0.000000e+00> : vector<8x128xf32>
      %41 = vector.multi_reduction <add>, %40, %cst_27 [0] : vector<2x8x128xf32> to vector<8x128xf32>
      %42 = arith.addf %39, %41 : vector<8x128xf32>
      %c0_28 = arith.constant 0 : index
      %c0_29 = arith.constant 0 : index
      %43 = vector.load %arg8[%c0_28, %c0_29] : memref<8x128xf32, #tpu.memory_space<vmem>>, vector<8x128xf32>
      tpu.vector_store %arg8[%c0_28, %c0_29], %42 {strides = array<i32>} : memref<8x128xf32, #tpu.memory_space<vmem>>, vector<8x128xf32>,
      %c0_30 = arith.constant 0 : index
      %c0_31 = arith.constant 0 : index
      %44 = vector.load %arg9[%c0_30, %c0_31] : memref<8x128xf32, #tpu.memory_space<vmem>>, vector<8x128xf32>
      %45 = arith.mulf %24, %25 : vector<2x8x128xf32>
      %cst_32 = arith.constant dense<0.000000e+00> : vector<8x128xf32>
      %46 = vector.multi_reduction <add>, %45, %cst_32 [0] : vector<2x8x128xf32> to vector<8x128xf32>
      %47 = arith.addf %44, %46 : vector<8x128xf32>
      %c0_33 = arith.constant 0 : index
      %c0_34 = arith.constant 0 : index
      %48 = vector.load %arg9[%c0_33, %c0_34] : memref<8x128xf32, #tpu.memory_space<vmem>>, vector<8x128xf32>
      tpu.vector_store %arg9[%c0_33, %c0_34], %47 {strides = array<i32>} : memref<8x128xf32, #tpu.memory_space<vmem>>, vector<8x128xf32>,
    } else {
    }
    %c0_i32_4 = arith.constant 0 : i32
    %12 = arith.cmpi eq, %arg0, %c0_i32_4 : i32
    %13 = arith.extui %12 : i1 to i32
    %c0_i32_5 = arith.constant 0 : i32
    %14 = arith.cmpi ne, %13, %c0_i32_5 : i32
    scf.if %14 {
      %c0 = arith.constant 0 : index
      %15 = memref.load %arg1[%c0] : memref<2xi32, #tpu.memory_space<smem>>
      %16 = arith.sitofp %15 : i32 to f32
      %c0_6 = arith.constant 0 : index
      %c0_7 = arith.constant 0 : index
      %17 = vector.load %arg5[%c0_6, %c0_7] : memref<8x128xf32, #tpu.memory_space<vmem>>, vector<8x128xf32>
      %18 = vector.shape_cast %17 : vector<8x128xf32> to vector<1x8x128xf32>
      %cst = arith.constant dense<0.000000e+00> : vector<1xf32>
      %19 = vector.multi_reduction <add>, %18, %cst [1, 2] : vector<1x8x128xf32> to vector<1xf32>
      %20 = vector.shape_cast %19 : vector<1xf32> to vector<1x1x1xf32>
      %21 = vector.extract %20[0, 0, 0] : f32 from vector<1x1x1xf32>
      %c0_8 = arith.constant 0 : index
      %c0_9 = arith.constant 0 : index
      %22 = vector.load %arg6[%c0_8, %c0_9] : memref<8x128xf32, #tpu.memory_space<vmem>>, vector<8x128xf32>
      %23 = vector.shape_cast %22 : vector<8x128xf32> to vector<1x8x128xf32>
      %cst_10 = arith.constant dense<0.000000e+00> : vector<1xf32>
      %24 = vector.multi_reduction <add>, %23, %cst_10 [1, 2] : vector<1x8x128xf32> to vector<1xf32>
      %25 = vector.shape_cast %24 : vector<1xf32> to vector<1x1x1xf32>
      %26 = vector.extract %25[0, 0, 0] : f32 from vector<1x1x1xf32>
      %c0_11 = arith.constant 0 : index
      %c0_12 = arith.constant 0 : index
      %27 = vector.load %arg7[%c0_11, %c0_12] : memref<8x128xf32, #tpu.memory_space<vmem>>, vector<8x128xf32>
      %28 = vector.shape_cast %27 : vector<8x128xf32> to vector<1x8x128xf32>
      %cst_13 = arith.constant dense<0.000000e+00> : vector<1xf32>
      %29 = vector.multi_reduction <add>, %28, %cst_13 [1, 2] : vector<1x8x128xf32> to vector<1xf32>
      %30 = vector.shape_cast %29 : vector<1xf32> to vector<1x1x1xf32>
      %31 = vector.extract %30[0, 0, 0] : f32 from vector<1x1x1xf32>
      %c0_14 = arith.constant 0 : index
      %c0_15 = arith.constant 0 : index
      %32 = vector.load %arg8[%c0_14, %c0_15] : memref<8x128xf32, #tpu.memory_space<vmem>>, vector<8x128xf32>
      %33 = vector.shape_cast %32 : vector<8x128xf32> to vector<1x8x128xf32>
      %cst_16 = arith.constant dense<0.000000e+00> : vector<1xf32>
      %34 = vector.multi_reduction <add>, %33, %cst_16 [1, 2] : vector<1x8x128xf32> to vector<1xf32>
      %35 = vector.shape_cast %34 : vector<1xf32> to vector<1x1x1xf32>
      %36 = vector.extract %35[0, 0, 0] : f32 from vector<1x1x1xf32>
      %c0_17 = arith.constant 0 : index
      %c0_18 = arith.constant 0 : index
      %37 = vector.load %arg9[%c0_17, %c0_18] : memref<8x128xf32, #tpu.memory_space<vmem>>, vector<8x128xf32>
      %38 = vector.shape_cast %37 : vector<8x128xf32> to vector<1x8x128xf32>
      %cst_19 = arith.constant dense<0.000000e+00> : vector<1xf32>
      %39 = vector.multi_reduction <add>, %38, %cst_19 [1, 2] : vector<1x8x128xf32> to vector<1xf32>
      %40 = vector.shape_cast %39 : vector<1xf32> to vector<1x1x1xf32>
      %41 = vector.extract %40[0, 0, 0] : f32 from vector<1x1x1xf32>
      %42 = arith.divf %21, %16 : f32
      %43 = arith.divf %26, %16 : f32
      %44 = arith.mulf %16, %42 : f32
      %45 = arith.mulf %44, %42 : f32
      %46 = arith.subf %31, %45 : f32
      %cst_20 = arith.constant 0.000000e+00 : f32
      %47 = arith.maximumf %46, %cst_20 : f32
      %48 = arith.mulf %16, %43 : f32
      %49 = arith.mulf %48, %43 : f32
      %50 = arith.subf %36, %49 : f32
      %cst_21 = arith.constant 0.000000e+00 : f32
      %51 = arith.maximumf %50, %cst_21 : f32
      %52 = arith.mulf %16, %42 : f32
      %53 = arith.mulf %52, %43 : f32
      %54 = arith.subf %41, %53 : f32
      %55 = math.sqrt %47 : f32
      %cst_22 = arith.constant 9.99999993E-9 : f32
      %56 = arith.addf %55, %cst_22 : f32
      %57 = math.sqrt %51 : f32
      %cst_23 = arith.constant 9.99999993E-9 : f32
      %58 = arith.addf %57, %cst_23 : f32
      %59 = arith.mulf %56, %58 : f32
      %60 = arith.divf %54, %59 : f32
      %cst_24 = arith.constant 1.000000e+00 : f32
      %61 = arith.subf %cst_24, %60 : f32
      %62 = math.log %61 : f32
      %c0_25 = arith.constant 0 : index
      %63 = memref.load %arg4[%c0_25] : memref<1xf32, #tpu.memory_space<smem>>
      memref.store %62, %arg4[%c0_25] : memref<1xf32, #tpu.memory_space<smem>>
    } else {
    }
    return
  }
  func.func @transform_0(%arg0: i32) -> i32 {
    %c0_i32 = arith.constant 0 : i32
    %c0_i32_0 = arith.constant 0 : i32
    return %c0_i32 : i32
  }
  func.func @transform_1(%arg0: i32) -> (i32, i32) {
    %c0_i32 = arith.constant 0 : i32
    %c0_i32_0 = arith.constant 0 : i32
    return %arg0, %c0_i32 : i32, i32
  }
  func.func @transform_2(%arg0: i32) -> (i32, i32) {
    %c0_i32 = arith.constant 0 : i32
    %c0_i32_0 = arith.constant 0 : i32
    return %arg0, %c0_i32 : i32, i32
  }
  func.func @transform_3(%arg0: i32) -> i32 {
    %c0_i32 = arith.constant 0 : i32
    %c0_i32_0 = arith.constant 0 : i32
    return %c0_i32 : i32
  }
}

</mosaic_0001>

<llo_original>
// kernel: plcc_loss.1
$region0: #{plcc_loss.1}
  #allocation0 [shape = 'u32[]', space=smem, size = 0x4, offset = 0x4, fixed_abs, tag = 'smem constant byte address 0x4 - core index']
  #allocation1 [shape = 'u32[72,128]{1,0:T(1,128)}', space=vmem, size = 0x9000, scoped, tag = 'internal scratch']
  #allocation2 [shape = 'f32[8,128]{1,0:T(8,128)}', space=vmem, size = 0x1000, scoped, tag = 'scratch operand']
  #allocation3 [shape = 'f32[8,128]{1,0:T(8,128)}', space=vmem, size = 0x1000, scoped, tag = 'scratch operand']
  #allocation4 [shape = 'f32[8,128]{1,0:T(8,128)}', space=vmem, size = 0x1000, scoped, tag = 'scratch operand']
  #allocation5 [shape = 'f32[8,128]{1,0:T(8,128)}', space=vmem, size = 0x1000, scoped, tag = 'scratch operand']
  #allocation6 [shape = 'f32[8,128]{1,0:T(8,128)}', space=vmem, size = 0x1000, scoped, tag = 'scratch operand']
  %s0 = inlined_call_operand.vmem [shape: s32[2], index: 0, kind: input, shape index: {}]
  %s1 = inlined_call_operand.vmem [shape: f32[16,128], index: 1, kind: input, shape index: {}]
  %s2 = inlined_call_operand.vmem [shape: f32[16,128], index: 2, kind: input, shape index: {}]
  %s3 = inlined_call_operand.hbm [shape: f32[1], index: 3, kind: output, shape index: {}]
  %s4 = sld [smem:[#allocation0]]
  $region42: #{plcc_loss.1} parent=0
    _
  %s6 = ssub.s32 1, %s4
  %s7 = scalar_select 0, %s6, %s4
  $region1: #{plcc_loss.1} parent=0
    #allocation7 [shape = 'u8[512]{0}', space=smem, size = 0x200, scoped, tag = 'input window, operand 0, single buffered']
    #allocation8 [shape = 's32[1]{0}', space=sflag, size = 0x4, scoped, tag = 'scoped memory for plcc_loss.1']
    #allocation9 [shape = 's32[1]{0}', space=sflag, size = 0x4, scoped, tag = 'scoped memory for plcc_loss.1']
    #allocation10 [shape = 'u8[512]{0}', space=smem, size = 0x200, scoped, tag = 'output window, operand 0, single buffered']
    %8 = vsyncpa [#allocation9], 0
    %9 = vsyncpa [#allocation8], 0
    // Predicated region
    $region2: #{plcc_loss.1} parent=1 // pred_check
      _
    $region3: #{plcc_loss.1} parent=1 // pred_check_branch
      %11 = sbr.rel (0) target = $region5
    $region4: #{plcc_loss.1} parent=1 // pred_region
      %13 = vsyncadd [#allocation9], 0
      %s15 = sshll.u32 %s0, 4
      %s16 = int_to_ptr.vmem [resolvable:$true] %s15
      %18 = dma.vmem_to_smem %s16, 16, [#allocation7], [#allocation9]
    $region5: #{plcc_loss.1} parent=1 // pred_fallthru
      _
    // Predicated region
    $region6: #{plcc_loss.1} parent=1 // pred_check
      _
    $region7: #{plcc_loss.1} parent=1 // pred_check_branch
      %20 = sbr.rel (0) target = $region9
    $region8: #{plcc_loss.1} parent=1 // pred_region
      _
    $region9: #{plcc_loss.1} parent=1 // pred_fallthru
      _
    // Predicated region
    $region10: #{plcc_loss.1} parent=1 // pred_check
      _
    $region11: #{plcc_loss.1} parent=1 // pred_check_branch
      %22 = sbr.rel (0) target = $region13
    $region12: #{plcc_loss.1} parent=1 // pred_region
      _
    $region13: #{plcc_loss.1} parent=1 // pred_fallthru
      _
    // Predicated region
    $region14: #{plcc_loss.1} parent=1 // pred_check
      _
    $region15: #{plcc_loss.1} parent=1 // pred_check_branch
      %24 = sbr.rel (0) target = $region17
    $region16: #{plcc_loss.1} parent=1 // pred_region
      %26 = dma.done [#allocation9], 16
    $region17: #{plcc_loss.1} parent=1 // pred_fallthru
      _
    %27 = sfence
    %p28 = scmp.eq.s32.totalorder 0, 0
    // Predicated region
    $region18: #{plcc_loss.1} parent=1 // pred_check
      %p29 = pneg %p28
    $region19: #{plcc_loss.1} parent=1 // pred_check_branch
      %31 = sbr.rel (%p29) target = $region21
    $region20: #{plcc_loss.1} parent=1 // pred_region
      %32 = vst [vmem:[#allocation2] sm:$0xff] 0.0
      %33 = vst [vmem:[#allocation3] sm:$0xff] 0.0
      %34 = vst [vmem:[#allocation4] sm:$0xff] 0.0
      %35 = vst [vmem:[#allocation5] sm:$0xff] 0.0
      %36 = vst [vmem:[#allocation6] sm:$0xff] 0.0
    $region21: #{plcc_loss.1} parent=1 // pred_fallthru
      _
    %s37 = sld [smem:[#allocation7 + $0x1]]
    %s38 = smul.u32 0, 16
    %s39 = ssub.s32 %s37, %s38
    %p40 = scmp.ge.s32.totalorder %s39, 16
    // Predicated region
    $region22: #{plcc_loss.1} parent=1 // pred_check
      %p41 = pneg %p40
    $region23: #{plcc_loss.1} parent=1 // pred_check_branch
      %43 = sbr.rel (%p41) target = $region25
    $region24: #{plcc_loss.1} parent=1 // pred_region
      %v44 = vld [vmem:[%s1] sm:$0xff]
      %v45 = vld [vmem:[%s1 + $0x8] sm:$0xff]
      %v46 = vld [vmem:[%s2] sm:$0xff]
      %v47 = vld [vmem:[%s2 + $0x8] sm:$0xff]
      %v48 = vld [vmem:[#allocation2] sm:$0xff]
      %v49 = vadd.f32 %v44, %v45
      %v50 = vadd.f32 %v48, %v49
      %51 = vst [vmem:[#allocation2] sm:$0xff] %v50
      %v52 = vld [vmem:[#allocation3] sm:$0xff]
      %v53 = vadd.f32 %v46, %v47
      %v54 = vadd.f32 %v52, %v53
      %55 = vst [vmem:[#allocation3] sm:$0xff] %v54
      %v56 = vld [vmem:[#allocation4] sm:$0xff]
      %v57 = vmul.f32 %v44, %v44
      %v58 = vmul.f32 %v45, %v45
      %v59 = vadd.f32 %v57, %v58
      %v60 = vadd.f32 %v56, %v59
      %61 = vst [vmem:[#allocation4] sm:$0xff] %v60
      %v62 = vld [vmem:[#allocation5] sm:$0xff]
      %v63 = vmul.f32 %v46, %v46
      %v64 = vmul.f32 %v47, %v47
      %v65 = vadd.f32 %v63, %v64
      %v66 = vadd.f32 %v62, %v65
      %67 = vst [vmem:[#allocation5] sm:$0xff] %v66
      %v68 = vld [vmem:[#allocation6] sm:$0xff]
      %v69 = vmul.f32 %v44, %v46
      %v70 = vmul.f32 %v45, %v47
      %v71 = vadd.f32 %v69, %v70
      %v72 = vadd.f32 %v68, %v71
      %73 = vst [vmem:[#allocation6] sm:$0xff] %v72
    $region25: #{plcc_loss.1} parent=1 // pred_fallthru
      _
    %p74 = scmp.lt.s32.totalorder %s39, 16
    // Predicated region
    $region26: #{plcc_loss.1} parent=1 // pred_check
      %p75 = pneg %p74
    $region27: #{plcc_loss.1} parent=1 // pred_check_branch
      %77 = sbr.rel (%p75) target = $region29
    $region28: #{plcc_loss.1} parent=1 // pred_region
      %v78 = vlaneseq
      %v79 = vshrl.u32 %v78, 7
      %v80 = vadd.s32 %v79, 8
      %v81 = vstv %s39
      %vm82 = vcmp.lt.s32.totalorder %v79, %v81
      %vm83 = vcmp.lt.s32.totalorder %v80, %v81
      %v84 = vld [vmem:[%s1] sm:$0xff]
      %v85 = vld [vmem:[%s1 + $0x8] sm:$0xff]
      %v86 = vsel %vm82, %v84, 0.0
      %v87 = vsel %vm83, %v85, 0.0
      %v88 = vld [vmem:[%s2] sm:$0xff]
      %v89 = vld [vmem:[%s2 + $0x8] sm:$0xff]
      %v90 = vsel %vm82, %v88, 0.0
      %v91 = vsel %vm83, %v89, 0.0
      %v92 = vld [vmem:[#allocation2] sm:$0xff]
      %v93 = vadd.f32 %v86, %v87
      %v94 = vadd.f32 %v92, %v93
      %95 = vst [vmem:[#allocation2] sm:$0xff] %v94
      %v96 = vld [vmem:[#allocation3] sm:$0xff]
      %v97 = vadd.f32 %v90, %v91
      %v98 = vadd.f32 %v96, %v97
      %99 = vst [vmem:[#allocation3] sm:$0xff] %v98
      %v100 = vld [vmem:[#allocation4] sm:$0xff]
      %v101 = vmul.f32 %v86, %v86
      %v102 = vmul.f32 %v87, %v87
      %v103 = vadd.f32 %v101, %v102
      %v104 = vadd.f32 %v100, %v103
      %105 = vst [vmem:[#allocation4] sm:$0xff] %v104
      %v106 = vld [vmem:[#allocation5] sm:$0xff]
      %v107 = vmul.f32 %v90, %v90
      %v108 = vmul.f32 %v91, %v91
      %v109 = vadd.f32 %v107, %v108
      %v110 = vadd.f32 %v106, %v109
      %111 = vst [vmem:[#allocation5] sm:$0xff] %v110
      %v112 = vld [vmem:[#allocation6] sm:$0xff]
      %v113 = vmul.f32 %v86, %v90
      %v114 = vmul.f32 %v87, %v91
      %v115 = vadd.f32 %v113, %v114
      %v116 = vadd.f32 %v112, %v115
      %117 = vst [vmem:[#allocation6] sm:$0xff] %v116
    $region29: #{plcc_loss.1} parent=1 // pred_fallthru
      _
    // Predicated region
    $region30: #{plcc_loss.1} parent=1 // pred_check
      %p118 = pneg %p28
    $region31: #{plcc_loss.1} parent=1 // pred_check_branch
      %120 = sbr.rel (%p118) target = $region33
    $region32: #{plcc_loss.1} parent=1 // pred_region
      %s121 = sld [smem:[#allocation7]]
      %s122 = scvt.s32.f32 %s121
      %v123 = vld [vmem:[#allocation2] sm:$0xff]
      %124 = vadd.xlane.f32.xlu0 %v123
      %v125 = vpop.xlane.xlu0 %124
      %v126 = vrot.slane %v125, 4
      %v127 = vadd.f32 %v125, %v126
      %v128 = vrot.slane %v127, 2
      %v129 = vadd.f32 %v127, %v128
      %v130 = vrot.slane %v129, 1
      %v131 = vadd.f32 %v129, %v130
      %s132 = vtos %v131
      %v133 = vld [vmem:[#allocation3] sm:$0xff]
      %134 = vadd.xlane.f32.xlu0 %v133
      %v135 = vpop.xlane.xlu0 %134
      %v136 = vrot.slane %v135, 4
      %v137 = vadd.f32 %v135, %v136
      %v138 = vrot.slane %v137, 2
      %v139 = vadd.f32 %v137, %v138
      %v140 = vrot.slane %v139, 1
      %v141 = vadd.f32 %v139, %v140
      %s142 = vtos %v141
      %v143 = vld [vmem:[#allocation4] sm:$0xff]
      %144 = vadd.xlane.f32.xlu0 %v143
      %v145 = vpop.xlane.xlu0 %144
      %v146 = vrot.slane %v145, 4
      %v147 = vadd.f32 %v145, %v146
      %v148 = vrot.slane %v147, 2
      %v149 = vadd.f32 %v147, %v148
      %v150 = vrot.slane %v149, 1
      %v151 = vadd.f32 %v149, %v150
      %s152 = vtos %v151
      %v153 = vld [vmem:[#allocation5] sm:$0xff]
      %154 = vadd.xlane.f32.xlu0 %v153
      %v155 = vpop.xlane.xlu0 %154
      %v156 = vrot.slane %v155, 4
      %v157 = vadd.f32 %v155, %v156
      %v158 = vrot.slane %v157, 2
      %v159 = vadd.f32 %v157, %v158
      %v160 = vrot.slane %v159, 1
      %v161 = vadd.f32 %v159, %v160
      %s162 = vtos %v161
      %v163 = vld [vmem:[#allocation6] sm:$0xff]
      %164 = vadd.xlane.f32.xlu0 %v163
      %v165 = vpop.xlane.xlu0 %164
      %v166 = vrot.slane %v165, 4
      %v167 = vadd.f32 %v165, %v166
      %v168 = vrot.slane %v167, 2
      %v169 = vadd.f32 %v167, %v168
      %v170 = vrot.slane %v169, 1
      %v171 = vadd.f32 %v169, %v170
      %s172 = vtos %v171
      %v173 = vstv %s122
      %v174 = vrcp.pop %v173
      %v175 = vmul.f32 %v173, %v174
      %v176 = vsub.f32 1.0, %v175
      %v177 = vmul.f32 %v174, %v176
      %v178 = vadd.f32 %v174, %v177
      %vm179 = vweird.f32 %v173
      %vm180 = vweird.f32 %v174
      %vm181 = vmor %vm179, %vm180
      %v182 = vsel %vm181, %v174, %v178
      %v183 = vand.u32 2147483647, %v173
      %vm184 = vcmp.eq.f32.partialorder %v183, 8.507059e+37
      %v185 = vand.u32 %v173, 2147483648
      %v186 = vor.u32 1.1754944e-38, %v185
      %v187 = vsel %vm184, %v186, %v182
      %s188 = vtos %v187
      %s189 = smul.f32 %s132, %s188
      %v190 = vstv %s122
      %v191 = vrcp.pop %v190
      %v192 = vmul.f32 %v190, %v191
      %v193 = vsub.f32 1.0, %v192
      %v194 = vmul.f32 %v191, %v193
      %v195 = vadd.f32 %v191, %v194
      %vm196 = vweird.f32 %v190
      %vm197 = vweird.f32 %v191
      %vm198 = vmor %vm196, %vm197
      %v199 = vsel %vm198, %v191, %v195
      %v200 = vand.u32 2147483647, %v190
      %vm201 = vcmp.eq.f32.partialorder %v200, 8.507059e+37
      %v202 = vand.u32 %v190, 2147483648
      %v203 = vor.u32 1.1754944e-38, %v202
      %v204 = vsel %vm201, %v203, %v199
      %s205 = vtos %v204
      %s206 = smul.f32 %s142, %s205
      %s207 = smul.f32 %s122, %s189
      %s208 = smul.f32 %s207, %s189
      %s209 = ssub.f32 %s152, %s208
      %s210 = smax.f32 %s209, 0.0
      %s211 = smul.f32 %s122, %s206
      %s212 = smul.f32 %s211, %s206
      %s213 = ssub.f32 %s162, %s212
      %s214 = smax.f32 %s213, 0.0
      %s215 = smul.f32 %s207, %s206
      %s216 = ssub.f32 %s172, %s215
      %v217 = vstv %s210
      %v218 = vrsqrt.pop %v217
      %v219 = vmul.f32 %v218, %v217
      %v220 = vmul.f32 %v219, %v218
      %v221 = vmul.f32 0.5, %v220
      %v222 = vsub.f32 1.5, %v221
      %v223 = vmul.f32 %v218, %v222
      %v224 = vmul.f32 %v217, %v223
      %vm225 = vcmp.eq.f32.partialorder %v217, inf
      %v226 = vsel %vm225, %v217, %v224
      %vm227 = vcmp.eq.f32.partialorder %v217, 0.0
      %v228 = vand.u32 %v217, 2147483648
      %v229 = vsel %vm227, %v228, %v226
      %s230 = vtos %v229
      %s231 = sadd.f32 %s230, 1e-08
      %v232 = vstv %s214
      %v233 = vrsqrt.pop %v232
      %v234 = vmul.f32 %v233, %v232
      %v235 = vmul.f32 %v234, %v233
      %v236 = vmul.f32 0.5, %v235
      %v237 = vsub.f32 1.5, %v236
      %v238 = vmul.f32 %v233, %v237
      %v239 = vmul.f32 %v232, %v238
      %vm240 = vcmp.eq.f32.partialorder %v232, inf
      %v241 = vsel %vm240, %v232, %v239
      %vm242 = vcmp.eq.f32.partialorder %v232, 0.0
      %v243 = vand.u32 %v232, 2147483648
      %v244 = vsel %vm242, %v243, %v241
      %s245 = vtos %v244
      %s246 = sadd.f32 %s245, 1e-08
      %s247 = smul.f32 %s231, %s246
      %v248 = vstv %s247
      %v249 = vrcp.pop %v248
      %v250 = vmul.f32 %v248, %v249
      %v251 = vsub.f32 1.0, %v250
      %v252 = vmul.f32 %v249, %v251
      %v253 = vadd.f32 %v249, %v252
      %vm254 = vweird.f32 %v248
      %vm255 = vweird.f32 %v249
      %vm256 = vmor %vm254, %vm255
      %v257 = vsel %vm256, %v249, %v253
      %v258 = vand.u32 2147483647, %v248
      %vm259 = vcmp.eq.f32.partialorder %v258, 8.507059e+37
      %v260 = vand.u32 %v248, 2147483648
      %v261 = vor.u32 1.1754944e-38, %v260
      %v262 = vsel %vm259, %v261, %v257
      %s263 = vtos %v262
      %s264 = smul.f32 %s216, %s263
      %s265 = ssub.f32 1.0, %s264
      %v266 = vstv %s265
      %v267 = vlog2.pop %v266
      %v268 = vmul.f32 %v267, 0.6931472
      %s269 = vtos %v268
      %s270 = scalar_lea.smem [#allocation10], 0
      %271 = sst [smem:[%s270]] %s269
    $region33: #{plcc_loss.1} parent=1 // pred_fallthru
      _
    // Predicated region
    $region34: #{plcc_loss.1} parent=1 // pred_check
      _
    $region35: #{plcc_loss.1} parent=1 // pred_check_branch
      %273 = sbr.rel (0) target = $region37
    $region36: #{plcc_loss.1} parent=1 // pred_region
      %275 = vsyncadd [#allocation8], 0
      %s277 = sshll.u32 %s3, 4
      %s278 = int_to_ptr.hbm [resolvable:$true] %s277
      %280 = dma.smem_to_hbm [#allocation10], 16, %s278, [#allocation8]
    $region37: #{plcc_loss.1} parent=1 // pred_fallthru
      _
    // Predicated region
    $region38: #{plcc_loss.1} parent=1 // pred_check
      _
    $region39: #{plcc_loss.1} parent=1 // pred_check_branch
      %282 = sbr.rel (0) target = $region41
    $region40: #{plcc_loss.1} parent=1 // pred_region
      %284 = dma.done [#allocation8], 16
    $region41: #{plcc_loss.1} parent=1 // pred_fallthru
      _
    %285 = sfence
    %286 = vsyncpa [#allocation8], 1
    %287 = vsyncpa [#allocation9], 1

</llo_original>
